<compile_context>
chip_gen: v7x
topology: tpu7x:2x2x1
jax: 0.10.0
libtpu: 0.0.40
codegen_flags: <defaults>
</compile_context>

<pallas_src>
import jax
import jax.numpy as jnp
from jax.experimental import pallas as pl
from jax.experimental.pallas import tpu as pltpu

_PACK = 8  # nodes folded into the lane axis (8 f32 sublanes -> 1 dense vreg row)


def _round_up(n: int, m: int) -> int:
    return ((n + m - 1) // m) * m


# -----------------------------------------------------------------------------
# Kernel
# -----------------------------------------------------------------------------
def mlp_decoder_kernel(x_ref, w1_ref, b1_ref, w2_ref, b2_ref, w3_ref, b3_ref,
                       o_ref):
    """One packed node tile through the whole 3-layer sum-skip MLP.

    x_ref / w*_ref are bf16 (MXU-native), b*_ref are f32, all accumulation and
    the residual stream are f32, the output is stored in f32.
    """
    x_in = x_ref[...]                                            # (tg, 8*D) bf16
    cdt = x_in.dtype

    # hidden layer 0: relu(linear) + residual sum  (dropout p=0.0 -> identity)
    h = jnp.dot(x_in, w1_ref[...], preferred_element_type=jnp.float32)
    h = h + b1_ref[...]
    x = jnp.maximum(h, 0.0) + x_in.astype(jnp.float32)

    # hidden layer 1: relu(linear) + residual sum
    h = jnp.dot(x.astype(cdt), w2_ref[...], preferred_element_type=jnp.float32)
    h = h + b2_ref[...]
    x = jnp.maximum(h, 0.0) + x

    # output layer: linear, final activation = identity ("none")
    y = jnp.dot(x.astype(cdt), w3_ref[...], preferred_element_type=jnp.float32)
    y = y + b3_ref[...]
    o_ref[...] = y.astype(o_ref.dtype)


# -----------------------------------------------------------------------------
# One-time parameter packing (hoisted out of the per-call path)
# -----------------------------------------------------------------------------
def pack_params(params, *, compute_dtype=jnp.bfloat16):
    """Build block-diagonal (I_8 kron W^T) weights and tiled biases once.

    params holds PyTorch-layout Linear weights (out, in) and biases (out,).
    Weights are cast to `compute_dtype` (bf16 by default) for full-rate MXU;
    biases stay f32 and are added to the f32 accumulator.
    """
    D = params["w1"].shape[1]
    H1 = params["w1"].shape[0]
    H2 = params["w2"].shape[0]
    O = params["w3"].shape[0]
    assert H1 == D and H2 == D, "skip='sum' requires hidden dims == input dim"
    assert params["w2"].shape[1] == H1 and params["w3"].shape[1] == H2

    eye = jnp.eye(_PACK, dtype=jnp.float32)

    def blkdiag(w):  # (out, in) -> (8*in, 8*out) block-diagonal, compute dtype
        return jnp.kron(eye, w.T.astype(jnp.float32)).astype(compute_dtype)

    def bias(b):     # (out,) -> (1, 8*out), f32
        return jnp.tile(b.astype(jnp.float32), _PACK).reshape(1, _PACK * b.shape[0])

    return {
        "w1": blkdiag(params["w1"]), "b1": bias(params["b1"]),
        "w2": blkdiag(params["w2"]), "b2": bias(params["b2"]),
        "w3": blkdiag(params["w3"]), "b3": bias(params["b3"]),
        "dims": (D, H1, H2, O),
    }


# -----------------------------------------------------------------------------
# Wrapper
# -----------------------------------------------------------------------------
def mlp_decoder(x, packed, *, tile_nodes=32768):
    """x: (N, D) float32 node embeddings. packed: output of pack_params()."""
    N, D = x.shape
    D_, H1, H2, O = packed["dims"]
    assert D == D_, f"input dim {D} != parameter dim {D_}"

    compute_dtype = packed["w1"].dtype
    x_itemsize = jnp.dtype(compute_dtype).itemsize

    # --- choose a node tile ---------------------------------------------------
    # Big tiles amortize the ~0.35 us per-grid-step overhead; an even number of
    # grid steps (>= 2 when N allows) gives both v7x TensorCores equal ranges
    # under dimension_semantics=("parallel",).  The tile must be a multiple of
    # 8*_PACK = 64 so the packed block keeps an (8, 128)-friendly shape.
    steps = max(2, pl.cdiv(N, tile_nodes))
    if steps % 2:
        steps += 1
    tile = _round_up(pl.cdiv(N, steps), 8 * _PACK)
    tile = min(tile, _round_up(tile_nodes, 8 * _PACK))
    n_pad = _round_up(N, tile)
    grid_m = n_pad // tile
    tg = tile // _PACK                       # packed rows per tile

    x = x.astype(compute_dtype)
    if n_pad != N:
        # TODO(synk): truly ragged N should be pre-padded upstream (graph
        # batching usually already aligns it) to avoid this extra HBM copy.
        x = jnp.pad(x, ((0, n_pad - N), (0, 0)))

    # Free row-major reshape: x_p[i, j*D + d] == x[8*i + j, d].
    x_p = x.reshape(n_pad // _PACK, _PACK * D)

    # Grid-invariant residents: constant index maps -> Pallas DMAs these tiny
    # blocks once and re-uses them for every grid step.
    full = lambda shape: pl.BlockSpec(shape, lambda i: (0, 0))

    weight_names = ("w1", "b1", "w2", "b2", "w3", "b3")
    weight_bytes = sum(int(packed[k].size) * packed[k].dtype.itemsize
                       for k in weight_names)

    # Advisory cost for XLA's scheduler (mem-bound custom call).
    cost = pl.CostEstimate(
        flops=int(2 * n_pad * (D * H1 + H1 * H2 + H2 * O)),
        transcendentals=0,
        bytes_accessed=int(n_pad * D * x_itemsize + n_pad * O * 4 + weight_bytes),
    )

    # Only override scoped VMEM when a user-requested tile would exceed the
    # smallest default budget (v5e: 16 MiB).  Default tile stays well under.
    x_tile_bytes = tile * D * x_itemsize
    out_tile_bytes = tile * O * 4
    vmem_est = 2 * (x_tile_bytes + out_tile_bytes) + 2 * weight_bytes
    cp_kwargs = dict(dimension_semantics=("parallel",))
    if vmem_est > 12 * 1024 * 1024:
        cp_kwargs["vmem_limit_bytes"] = int(vmem_est * 1.25)

    out_p = pl.pallas_call(
        mlp_decoder_kernel,
        out_shape=jax.ShapeDtypeStruct((n_pad // _PACK, _PACK * O), jnp.float32),
        grid_spec=pltpu.PrefetchScalarGridSpec(
            num_scalar_prefetch=0,
            grid=(grid_m,),
            in_specs=[
                pl.BlockSpec((tg, _PACK * D), lambda i: (i, 0)),       # packed x
                full((_PACK * D, _PACK * H1)), full((1, _PACK * H1)),  # layer 0
                full((_PACK * H1, _PACK * H2)), full((1, _PACK * H2)), # layer 1
                full((_PACK * H2, _PACK * O)), full((1, _PACK * O)),   # output
            ],
            out_specs=pl.BlockSpec((tg, _PACK * O), lambda i: (i, 0)),
        ),
        compiler_params=pltpu.CompilerParams(**cp_kwargs),
        cost_estimate=cost,
    )(x_p, packed["w1"], packed["b1"], packed["w2"], packed["b2"],
      packed["w3"], packed["b3"])

    # Free row-major un-pack; drop padding rows only if any were added.
    out = out_p.reshape(n_pad, O)
    return out[:N] if n_pad != N else out


# -----------------------------------------------------------------------------
# Plain-JAX reference (mirrors the PyTorch forward exactly, f32 throughout)
# -----------------------------------------------------------------------------
def mlp_decoder_ref(x, params):
    def linear(v, w, b):
        return v @ w.T + b
    h = jnp.maximum(linear(x, params["w1"], params["b1"]), 0.0)
    x = h + x                                   # skip = "sum"
    h = jnp.maximum(linear(x, params["w2"], params["b2"]), 0.0)
    x = h + x
    return linear(x, params["w3"], params["b3"])  # final activation: identity


if __name__ == "__main__":
    key = jax.random.PRNGKey(0)
    D, OUT = 32, 16                 # feature dim, out dim
    H = [D, D]                      # hidden dims (must equal D for sum-skip)

    ks = jax.random.split(key, 7)

    # Deterministic synthetic parameters (PyTorch Linear layout: (out, in)).
    scale = 0.1
    params = {
        "w1": scale * jax.random.normal(ks[1], (H[0], D), dtype=jnp.float32),
        "b1": scale * jax.random.normal(ks[2], (H[0],), dtype=jnp.float32),
        "w2": scale * jax.random.normal(ks[3], (H[1], H[0]), dtype=jnp.float32),
        "b2": scale * jax.random.normal(ks[4], (H[1],), dtype=jnp.float32),
        "w3": scale * jax.random.normal(ks[5], (OUT, H[1]), dtype=jnp.float32),
        "b3": scale * jax.random.normal(ks[6], (OUT,), dtype=jnp.float32),
    }
    packed = pack_params(params)    # one-time weight packing (bf16 block-diag)

    # Case 1: tile-aligned N (typical batched-graph case) -> no wrapper pad/slice.
    N = 256
    x = jax.random.normal(ks[0], (N, D), dtype=jnp.float32)
    out = jax.block_until_ready(mlp_decoder(x, packed))
    ref = mlp_decoder_ref(x, params)
    assert out.shape == (N, OUT)
    assert jnp.allclose(out, ref, atol=5e-2, rtol=5e-2), (
        float(jnp.max(jnp.abs(out - ref))))

    # Case 2: ragged N -> exercises the padding fallback path.
    N2 = 200
    x2 = jax.random.normal(ks[0], (N2, D), dtype=jnp.float32)
    out2 = jax.block_until_ready(mlp_decoder(x2, packed))
    ref2 = mlp_decoder_ref(x2, params)
    assert out2.shape == (N2, OUT)
    assert jnp.allclose(out2, ref2, atol=5e-2, rtol=5e-2), (
        float(jnp.max(jnp.abs(out2 - ref2))))

    print("KERNEL_OK")
</pallas_src>

<mosaic_0001>
module attributes {stable_mosaic.version = 11 : i64} {
  func.func @mlp_decoder_kernel(%arg0: i32, %arg1: memref<16x256xbf16, #tpu.memory_space<vmem>>, %arg2: memref<256x256xbf16, #tpu.memory_space<vmem>>, %arg3: memref<1x256xf32, #tpu.memory_space<vmem>>, %arg4: memref<256x256xbf16, #tpu.memory_space<vmem>>, %arg5: memref<1x256xf32, #tpu.memory_space<vmem>>, %arg6: memref<256x128xbf16, #tpu.memory_space<vmem>>, %arg7: memref<1x128xf32, #tpu.memory_space<vmem>>, %arg8: memref<16x128xf32, #tpu.memory_space<vmem>>) attributes {dimension_semantics = [#tpu.dimension_semantics<parallel>], iteration_bounds = array<i64: 2>, scalar_prefetch = 0 : i64, scratch_operands = 0 : i64, tpu.core_type = #tpu.core_type<tc>, window_params = [{transform_indices = @transform_0, window_bounds = array<i64: 16, 256>}, {pipeline_mode = #tpu.pipeline_mode<synchronous>, transform_indices = @transform_1, window_bounds = array<i64: 256, 256>}, {pipeline_mode = #tpu.pipeline_mode<synchronous>, transform_indices = @transform_2, window_bounds = array<i64: 1, 256>}, {pipeline_mode = #tpu.pipeline_mode<synchronous>, transform_indices = @transform_3, window_bounds = array<i64: 256, 256>}, {pipeline_mode = #tpu.pipeline_mode<synchronous>, transform_indices = @transform_4, window_bounds = array<i64: 1, 256>}, {pipeline_mode = #tpu.pipeline_mode<synchronous>, transform_indices = @transform_5, window_bounds = array<i64: 256, 128>}, {pipeline_mode = #tpu.pipeline_mode<synchronous>, transform_indices = @transform_6, window_bounds = array<i64: 1, 128>}, {transform_indices = @transform_7, window_bounds = array<i64: 16, 128>}]} {
    %c0 = arith.constant 0 : index
    %c0_0 = arith.constant 0 : index
    %0 = vector.load %arg1[%c0, %c0_0] : memref<16x256xbf16, #tpu.memory_space<vmem>>, vector<16x256xbf16>
    %c0_1 = arith.constant 0 : index
    %c0_2 = arith.constant 0 : index
    %1 = vector.load %arg2[%c0_1, %c0_2] : memref<256x256xbf16, #tpu.memory_space<vmem>>, vector<256x256xbf16>
    %cst = arith.constant dense<0.000000e+00> : vector<16x256xf32>
    %2 = tpu.matmul %0, %1, %cst {dimension_numbers = #tpu.dot_dimension_numbers<[1], [0], [0], [1], [0, 0, 1, 1], [], []>} : vector<16x256xbf16>, vector<256x256xbf16>, vector<16x256xf32> -> vector<16x256xf32>
    %c0_3 = arith.constant 0 : index
    %c0_4 = arith.constant 0 : index
    %3 = vector.load %arg3[%c0_3, %c0_4] : memref<1x256xf32, #tpu.memory_space<vmem>>, vector<1x256xf32>
    %4 = vector.broadcast %3 : vector<1x256xf32> to vector<16x256xf32>
    %5 = arith.addf %2, %4 : vector<16x256xf32>
    %cst_5 = arith.constant 0.000000e+00 : f32
    %6 = vector.broadcast %cst_5 : f32 to vector<16x256xf32>
    %7 = arith.maximumf %5, %6 : vector<16x256xf32>
    %8 = arith.extf %0 : vector<16x256xbf16> to vector<16x256xf32>
    %9 = arith.addf %7, %8 : vector<16x256xf32>
    %10 = arith.truncf %9 : vector<16x256xf32> to vector<16x256xbf16>
    %c0_6 = arith.constant 0 : index
    %c0_7 = arith.constant 0 : index
    %11 = vector.load %arg4[%c0_6, %c0_7] : memref<256x256xbf16, #tpu.memory_space<vmem>>, vector<256x256xbf16>
    %cst_8 = arith.constant dense<0.000000e+00> : vector<16x256xf32>
    %12 = tpu.matmul %10, %11, %cst_8 {dimension_numbers = #tpu.dot_dimension_numbers<[1], [0], [0], [1], [0, 0, 1, 1], [], []>} : vector<16x256xbf16>, vector<256x256xbf16>, vector<16x256xf32> -> vector<16x256xf32>
    %c0_9 = arith.constant 0 : index
    %c0_10 = arith.constant 0 : index
    %13 = vector.load %arg5[%c0_9, %c0_10] : memref<1x256xf32, #tpu.memory_space<vmem>>, vector<1x256xf32>
    %14 = vector.broadcast %13 : vector<1x256xf32> to vector<16x256xf32>
    %15 = arith.addf %12, %14 : vector<16x256xf32>
    %cst_11 = arith.constant 0.000000e+00 : f32
    %16 = vector.broadcast %cst_11 : f32 to vector<16x256xf32>
    %17 = arith.maximumf %15, %16 : vector<16x256xf32>
    %18 = arith.addf %17, %9 : vector<16x256xf32>
    %19 = arith.truncf %18 : vector<16x256xf32> to vector<16x256xbf16>
    %c0_12 = arith.constant 0 : index
    %c0_13 = arith.constant 0 : index
    %20 = vector.load %arg6[%c0_12, %c0_13] : memref<256x128xbf16, #tpu.memory_space<vmem>>, vector<256x128xbf16>
    %cst_14 = arith.constant dense<0.000000e+00> : vector<16x128xf32>
    %21 = tpu.matmul %19, %20, %cst_14 {dimension_numbers = #tpu.dot_dimension_numbers<[1], [0], [0], [1], [0, 0, 1, 1], [], []>} : vector<16x256xbf16>, vector<256x128xbf16>, vector<16x128xf32> -> vector<16x128xf32>
    %c0_15 = arith.constant 0 : index
    %c0_16 = arith.constant 0 : index
    %22 = vector.load %arg7[%c0_15, %c0_16] : memref<1x128xf32, #tpu.memory_space<vmem>>, vector<1x128xf32>
    %23 = vector.broadcast %22 : vector<1x128xf32> to vector<16x128xf32>
    %24 = arith.addf %21, %23 : vector<16x128xf32>
    %c0_17 = arith.constant 0 : index
    %c0_18 = arith.constant 0 : index
    %25 = vector.load %arg8[%c0_17, %c0_18] : memref<16x128xf32, #tpu.memory_space<vmem>>, vector<16x128xf32>
    tpu.vector_store %arg8[%c0_17, %c0_18], %24 {strides = array<i32>} : memref<16x128xf32, #tpu.memory_space<vmem>>, vector<16x128xf32>,
    return
  }
  func.func @transform_0(%arg0: i32) -> (i32, i32) {
    %c0_i32 = arith.constant 0 : i32
    %c0_i32_0 = arith.constant 0 : i32
    return %arg0, %c0_i32 : i32, i32
  }
  func.func @transform_1(%arg0: i32) -> (i32, i32) {
    %c0_i32 = arith.constant 0 : i32
    %c0_i32_0 = arith.constant 0 : i32
    %c0_i32_1 = arith.constant 0 : i32
    return %c0_i32, %c0_i32_0 : i32, i32
  }
  func.func @transform_2(%arg0: i32) -> (i32, i32) {
    %c0_i32 = arith.constant 0 : i32
    %c0_i32_0 = arith.constant 0 : i32
    %c0_i32_1 = arith.constant 0 : i32
    return %c0_i32, %c0_i32_0 : i32, i32
  }
  func.func @transform_3(%arg0: i32) -> (i32, i32) {
    %c0_i32 = arith.constant 0 : i32
    %c0_i32_0 = arith.constant 0 : i32
    %c0_i32_1 = arith.constant 0 : i32
    return %c0_i32, %c0_i32_0 : i32, i32
  }
  func.func @transform_4(%arg0: i32) -> (i32, i32) {
    %c0_i32 = arith.constant 0 : i32
    %c0_i32_0 = arith.constant 0 : i32
    %c0_i32_1 = arith.constant 0 : i32
    return %c0_i32, %c0_i32_0 : i32, i32
  }
  func.func @transform_5(%arg0: i32) -> (i32, i32) {
    %c0_i32 = arith.constant 0 : i32
    %c0_i32_0 = arith.constant 0 : i32
    %c0_i32_1 = arith.constant 0 : i32
    return %c0_i32, %c0_i32_0 : i32, i32
  }
  func.func @transform_6(%arg0: i32) -> (i32, i32) {
    %c0_i32 = arith.constant 0 : i32
    %c0_i32_0 = arith.constant 0 : i32
    %c0_i32_1 = arith.constant 0 : i32
    return %c0_i32, %c0_i32_0 : i32, i32
  }
  func.func @transform_7(%arg0: i32) -> (i32, i32) {
    %c0_i32 = arith.constant 0 : i32
    %c0_i32_0 = arith.constant 0 : i32
    return %arg0, %c0_i32 : i32, i32
  }
}

</mosaic_0001>

<llo_original>
// kernel: tpu_custom_call.1
$region0: #{tpu_custom_call.1}
  #allocation0 [shape = 'u32[]', space=smem, size = 0x4, offset = 0x4, fixed_abs, tag = 'smem constant byte address 0x4 - core index']
  #allocation1 [shape = 'u32[144,128]{1,0:T(1,128)}', space=vmem, size = 0x12000, scoped, tag = 'internal scratch']
  %s0 = inlined_call_operand.hbm [shape: bf16[32,256], index: 0, kind: input, shape index: {}]
  %s1 = inlined_call_operand.hbm [shape: bf16[256,256], index: 1, kind: input, shape index: {}]
  %s2 = inlined_call_operand.vmem [shape: f32[1,256], index: 2, kind: input, shape index: {}]
  %s3 = inlined_call_operand.hbm [shape: bf16[256,256], index: 3, kind: input, shape index: {}]
  %s4 = inlined_call_operand.vmem [shape: f32[1,256], index: 4, kind: input, shape index: {}]
  %s5 = inlined_call_operand.hbm [shape: bf16[256,128], index: 5, kind: input, shape index: {}]
  %s6 = inlined_call_operand.vmem [shape: f32[1,128], index: 6, kind: input, shape index: {}]
  %s7 = inlined_call_operand.hbm [shape: f32[32,128], index: 7, kind: output, shape index: {}]
  %s8 = sld [smem:[#allocation0]]
  $region77: #{tpu_custom_call.1} parent=0
    _
  %s10 = ssub.s32 1, %s8
  %s11 = scalar_select 0, %s10, %s8
  $region1: #{tpu_custom_call.1} parent=0
    #allocation2 [shape = 'u8[16384]{0}', space=vmem, size = 0x4000, scoped, tag = 'input window, operand 0']
    #allocation3 [shape = 's32[2]{0}', space=sflag, size = 0x8, scoped, tag = 'scoped memory for tpu_custom_call.1']
    #allocation4 [shape = 's32[2]{0}', space=sflag, size = 0x8, scoped, tag = 'scoped memory for tpu_custom_call.1']
    #allocation5 [shape = 'u8[131072]{0}', space=vmem, size = 0x20000, scoped, tag = 'input window, operand 1, single buffered']
    #allocation6 [shape = 's32[1]{0}', space=sflag, size = 0x4, scoped, tag = 'scoped memory for tpu_custom_call.1']
    #allocation7 [shape = 'u8[131072]{0}', space=vmem, size = 0x20000, scoped, tag = 'input window, operand 3, single buffered']
    #allocation8 [shape = 'u8[65536]{0}', space=vmem, size = 0x10000, scoped, tag = 'input window, operand 5, single buffered']
    #allocation9 [shape = 's32[1]{0}', space=sflag, size = 0x4, scoped, tag = 'scoped memory for tpu_custom_call.1']
    #allocation10 [shape = 'u8[16384]{0}', space=vmem, size = 0x4000, scoped, tag = 'output window, operand 0']
    %12 = vsyncpa [#allocation3], 0
    %s13 = scalar_lea.sflag [#allocation3], 1
    %14 = vsyncpa %s13, 0
    %15 = vsyncpa [#allocation6], 0
    %16 = vsyncpa [#allocation9], 0
    %17 = vsyncpa [#allocation4], 0
    %s18 = scalar_lea.sflag [#allocation4], 1
    %19 = vsyncpa %s18, 0
    loop: start=0, step=1, limit=4
    $region2: #{tpu_custom_call.1} parent=1 // loop_pre_header
      _
    $region3: #{tpu_custom_call.1} parent=1 // loop_header
      %s21 = sphi 0, %s25
      %p22 = scmp.ge.s32.totalorder %s21, 4
      %s31 = sphi 0, %s33
      %s34 = sphi 0, %s31
      %s35 = sphi 0, %s34
      %s51 = sphi 0, %s35
      %s55 = sphi 0, %s55
      %s57 = sphi 0, %s55
      %s58 = sphi 0, %s57
      %s72 = sphi 0, %s58
      %s76 = sphi 0, %s76
      %s78 = sphi 0, %s76
      %s79 = sphi 0, %s78
      %s93 = sphi 0, %s79
      %s97 = sphi 0, %s97
      %s99 = sphi 0, %s97
      %s100 = sphi 0, %s99
      %s114 = sphi 0, %s100
      %s118 = sphi 0, %s118
      %s120 = sphi 0, %s118
      %s121 = sphi 0, %s120
      %s135 = sphi 0, %s121
      %s139 = sphi 0, %s139
      %s141 = sphi 0, %s139
      %s142 = sphi 0, %s141
      %s156 = sphi 0, %s142
      %s160 = sphi 0, %s160
      %s162 = sphi 0, %s160
      %s163 = sphi 0, %s162
      %s177 = sphi 0, %s163
      %s183 = sphi 0, %s185
      %s186 = sphi 0, %s183
      %s187 = sphi 0, %s186
      %s203 = sphi 0, %s187
    $region4: #{tpu_custom_call.1} parent=1 // loop_header_branch
      %24 = sbr.rel (%p22) target = $region8
    $region5: #{tpu_custom_call.1} parent=1 // loop_body
      %s26 = ssub.s32 %s21, 1
      %s27 = ssub.s32 %s21, 2
      %s28 = sadd.s32 %s21, 1
      %s29 = ssub.s32 %s21, %s28
      %p30 = scmp.eq.s32.totalorder %s29, 0
      %s32 = sadd.s32 %s31, 1
      %s33 = scalar_select %p30, %s31, %s32
      %p36 = pneg %p30
      %p37 = scmp.eq.s32.totalorder %s21, 1
      %p38 = por %p36, %p37
      %p39 = scmp.ne.s32.totalorder %s31, %s34
      %p40 = scmp.eq.s32.totalorder %s21, 0
      %p41 = por %p39, %p40
      %p42 = scmp.ne.s32.totalorder %s31, %s34
      %p43 = scmp.eq.s32.totalorder %s26, 1
      %p44 = por %p42, %p43
      %p45 = scmp.ne.s32.totalorder %s34, %s35
      %p46 = scmp.eq.s32.totalorder %s26, 0
      %p47 = por %p45, %p46
      %p48 = scmp.ne.s32.totalorder %s34, %s35
      %p49 = scmp.eq.s32.totalorder %s27, 1
      %p50 = por %p48, %p49
      %p52 = scmp.ne.s32.totalorder %s35, %s51
      %p53 = scmp.eq.s32.totalorder %s27, 0
      %p54 = por %p52, %p53
      %s56 = sadd.s32 %s55, 1
      %p59 = scmp.eq.s32.totalorder %s21, 1
      %p60 = scmp.ne.s32.totalorder %s55, %s57
      %p61 = scmp.eq.s32.totalorder %s21, 0
      %p62 = por %p60, %p61
      %p63 = scmp.ne.s32.totalorder %s55, %s57
      %p64 = scmp.eq.s32.totalorder %s26, 1
      %p65 = por %p63, %p64
      %p66 = scmp.ne.s32.totalorder %s57, %s58
      %p67 = scmp.eq.s32.totalorder %s26, 0
      %p68 = por %p66, %p67
      %p69 = scmp.ne.s32.totalorder %s57, %s58
      %p70 = scmp.eq.s32.totalorder %s27, 1
      %p71 = por %p69, %p70
      %p73 = scmp.ne.s32.totalorder %s58, %s72
      %p74 = scmp.eq.s32.totalorder %s27, 0
      %p75 = por %p73, %p74
      %s77 = sadd.s32 %s76, 1
      %p80 = scmp.eq.s32.totalorder %s21, 1
      %p81 = scmp.ne.s32.totalorder %s76, %s78
      %p82 = scmp.eq.s32.totalorder %s21, 0
      %p83 = por %p81, %p82
      %p84 = scmp.ne.s32.totalorder %s76, %s78
      %p85 = scmp.eq.s32.totalorder %s26, 1
      %p86 = por %p84, %p85
      %p87 = scmp.ne.s32.totalorder %s78, %s79
      %p88 = scmp.eq.s32.totalorder %s26, 0
      %p89 = por %p87, %p88
      %p90 = scmp.ne.s32.totalorder %s78, %s79
      %p91 = scmp.eq.s32.totalorder %s27, 1
      %p92 = por %p90, %p91
      %p94 = scmp.ne.s32.totalorder %s79, %s93
      %p95 = scmp.eq.s32.totalorder %s27, 0
      %p96 = por %p94, %p95
      %s98 = sadd.s32 %s97, 1
      %p101 = scmp.eq.s32.totalorder %s21, 1
      %p102 = scmp.ne.s32.totalorder %s97, %s99
      %p103 = scmp.eq.s32.totalorder %s21, 0
      %p104 = por %p102, %p103
      %p105 = scmp.ne.s32.totalorder %s97, %s99
      %p106 = scmp.eq.s32.totalorder %s26, 1
      %p107 = por %p105, %p106
      %p108 = scmp.ne.s32.totalorder %s99, %s100
      %p109 = scmp.eq.s32.totalorder %s26, 0
      %p110 = por %p108, %p109
      %p111 = scmp.ne.s32.totalorder %s99, %s100
      %p112 = scmp.eq.s32.totalorder %s27, 1
      %p113 = por %p111, %p112
      %p115 = scmp.ne.s32.totalorder %s100, %s114
      %p116 = scmp.eq.s32.totalorder %s27, 0
      %p117 = por %p115, %p116
      %s119 = sadd.s32 %s118, 1
      %p122 = scmp.eq.s32.totalorder %s21, 1
      %p123 = scmp.ne.s32.totalorder %s118, %s120
      %p124 = scmp.eq.s32.totalorder %s21, 0
      %p125 = por %p123, %p124
      %p126 = scmp.ne.s32.totalorder %s118, %s120
      %p127 = scmp.eq.s32.totalorder %s26, 1
      %p128 = por %p126, %p127
      %p129 = scmp.ne.s32.totalorder %s120, %s121
      %p130 = scmp.eq.s32.totalorder %s26, 0
      %p131 = por %p129, %p130
      %p132 = scmp.ne.s32.totalorder %s120, %s121
      %p133 = scmp.eq.s32.totalorder %s27, 1
      %p134 = por %p132, %p133
      %p136 = scmp.ne.s32.totalorder %s121, %s135
      %p137 = scmp.eq.s32.totalorder %s27, 0
      %p138 = por %p136, %p137
      %s140 = sadd.s32 %s139, 1
      %p143 = scmp.eq.s32.totalorder %s21, 1
      %p144 = scmp.ne.s32.totalorder %s139, %s141
      %p145 = scmp.eq.s32.totalorder %s21, 0
      %p146 = por %p144, %p145
      %p147 = scmp.ne.s32.totalorder %s139, %s141
      %p148 = scmp.eq.s32.totalorder %s26, 1
      %p149 = por %p147, %p148
      %p150 = scmp.ne.s32.totalorder %s141, %s142
      %p151 = scmp.eq.s32.totalorder %s26, 0
      %p152 = por %p150, %p151
      %p153 = scmp.ne.s32.totalorder %s141, %s142
      %p154 = scmp.eq.s32.totalorder %s27, 1
      %p155 = por %p153, %p154
      %p157 = scmp.ne.s32.totalorder %s142, %s156
      %p158 = scmp.eq.s32.totalorder %s27, 0
      %p159 = por %p157, %p158
      %s161 = sadd.s32 %s160, 1
      %p164 = scmp.eq.s32.totalorder %s21, 1
      %p165 = scmp.ne.s32.totalorder %s160, %s162
      %p166 = scmp.eq.s32.totalorder %s21, 0
      %p167 = por %p165, %p166
      %p168 = scmp.ne.s32.totalorder %s160, %s162
      %p169 = scmp.eq.s32.totalorder %s26, 1
      %p170 = por %p168, %p169
      %p171 = scmp.ne.s32.totalorder %s162, %s163
      %p172 = scmp.eq.s32.totalorder %s26, 0
      %p173 = por %p171, %p172
      %p174 = scmp.ne.s32.totalorder %s162, %s163
      %p175 = scmp.eq.s32.totalorder %s27, 1
      %p176 = por %p174, %p175
      %p178 = scmp.ne.s32.totalorder %s163, %s177
      %p179 = scmp.eq.s32.totalorder %s27, 0
      %p180 = por %p178, %p179
      %s181 = ssub.s32 %s21, %s28
      %p182 = scmp.eq.s32.totalorder %s181, 0
      %s184 = sadd.s32 %s183, 1
      %s185 = scalar_select %p182, %s183, %s184
      %p188 = pneg %p182
      %p189 = scmp.eq.s32.totalorder %s21, 1
      %p190 = por %p188, %p189
      %p191 = scmp.ne.s32.totalorder %s183, %s186
      %p192 = scmp.eq.s32.totalorder %s21, 0
      %p193 = por %p191, %p192
      %p194 = scmp.ne.s32.totalorder %s183, %s186
      %p195 = scmp.eq.s32.totalorder %s26, 1
      %p196 = por %p194, %p195
      %p197 = scmp.ne.s32.totalorder %s186, %s187
      %p198 = scmp.eq.s32.totalorder %s26, 0
      %p199 = por %p197, %p198
      %p200 = scmp.ne.s32.totalorder %s186, %s187
      %p201 = scmp.eq.s32.totalorder %s27, 1
      %p202 = por %p200, %p201
      %p204 = scmp.ne.s32.totalorder %s187, %s203
      %p205 = scmp.eq.s32.totalorder %s27, 0
      %p206 = por %p204, %p205
      %p207 = scmp.le.s32.totalorder 1, %s21
      %p208 = scmp.lt.s32.totalorder %s21, 3
      %p209 = pnand %p207, %p208
      %p210 = pneg %p209
      // Predicated region
      $region9: #{tpu_custom_call.1} parent=5 // pred_check
        _
      $region10: #{tpu_custom_call.1} parent=5 // pred_check_branch
        %212 = sbr.rel (%p209) target = $region12
      $region11: #{tpu_custom_call.1} parent=5 // pred_region
        %s213 = ssub.s32 %s21, 1
        // Predicated region
        $region13: #{tpu_custom_call.1} parent=11 // pred_check
          %p214 = pneg %p68
        $region14: #{tpu_custom_call.1} parent=11 // pred_check_branch
          %216 = sbr.rel (%p214) target = $region16
        $region15: #{tpu_custom_call.1} parent=11 // pred_region
          %s218 = ssub.s32 4096, 4096
          %219 = vsyncadd [#allocation6], %s218
          %s220 = sshll.u32 [#allocation5], 4
          %s221 = int_to_ptr.vmem [resolvable:$true] %s220
          %226 = dma.hbm_to_vmem [thread:$0]  %s1, 4096, %s221, [#allocation6], 128, 128, 8
        $region16: #{tpu_custom_call.1} parent=11 // pred_fallthru
          _
        // Predicated region
        $region17: #{tpu_custom_call.1} parent=11 // pred_check
          %p227 = pneg %p89
        $region18: #{tpu_custom_call.1} parent=11 // pred_check_branch
          %229 = sbr.rel (%p227) target = $region20
        $region19: #{tpu_custom_call.1} parent=11 // pred_region
          _
        $region20: #{tpu_custom_call.1} parent=11 // pred_fallthru
          _
        // Predicated region
        $region21: #{tpu_custom_call.1} parent=11 // pred_check
          %p230 = pneg %p110
        $region22: #{tpu_custom_call.1} parent=11 // pred_check_branch
          %232 = sbr.rel (%p230) target = $region24
        $region23: #{tpu_custom_call.1} parent=11 // pred_region
          %s234 = ssub.s32 4096, 4096
          %235 = vsyncadd [#allocation6], %s234
          %s236 = sshll.u32 [#allocation7], 4
          %s237 = int_to_ptr.vmem [resolvable:$true] %s236
          %242 = dma.hbm_to_vmem [thread:$0]  %s3, 4096, %s237, [#allocation6], 128, 128, 8
        $region24: #{tpu_custom_call.1} parent=11 // pred_fallthru
          _
        // Predicated region
        $region25: #{tpu_custom_call.1} parent=11 // pred_check
          %p243 = pneg %p131
        $region26: #{tpu_custom_call.1} parent=11 // pred_check_branch
          %245 = sbr.rel (%p243) target = $region28
        $region27: #{tpu_custom_call.1} parent=11 // pred_region
          _
        $region28: #{tpu_custom_call.1} parent=11 // pred_fallthru
          _
        // Predicated region
        $region29: #{tpu_custom_call.1} parent=11 // pred_check
          %p246 = pneg %p152
        $region30: #{tpu_custom_call.1} parent=11 // pred_check_branch
          %248 = sbr.rel (%p246) target = $region32
        $region31: #{tpu_custom_call.1} parent=11 // pred_region
          %s250 = ssub.s32 2048, 2048
          %251 = vsyncadd [#allocation9], %s250
          %s252 = sshll.u32 [#allocation8], 4
          %s253 = int_to_ptr.vmem [resolvable:$true] %s252
          %258 = dma.hbm_to_vmem [thread:$0]  %s5, 2048, %s253, [#allocation9], 64, 64, 4
        $region32: #{tpu_custom_call.1} parent=11 // pred_fallthru
          _
        // Predicated region
        $region33: #{tpu_custom_call.1} parent=11 // pred_check
          %p259 = pneg %p173
        $region34: #{tpu_custom_call.1} parent=11 // pred_check_branch
          %261 = sbr.rel (%p259) target = $region36
        $region35: #{tpu_custom_call.1} parent=11 // pred_region
          _
        $region36: #{tpu_custom_call.1} parent=11 // pred_fallthru
          _
      $region12: #{tpu_custom_call.1} parent=5 // pred_fallthru
        _
      %p262 = scmp.lt.s32.totalorder %s21, 2
      // Predicated region
      $region37: #{tpu_custom_call.1} parent=5 // pred_check
        %p263 = pneg %p262
      $region38: #{tpu_custom_call.1} parent=5 // pred_check_branch
        %265 = sbr.rel (%p263) target = $region40
      $region39: #{tpu_custom_call.1} parent=5 // pred_region
        // Predicated region
        $region41: #{tpu_custom_call.1} parent=39 // pred_check
          %p266 = pneg %p41
        $region42: #{tpu_custom_call.1} parent=39 // pred_check_branch
          %268 = sbr.rel (%p266) target = $region44
        $region43: #{tpu_custom_call.1} parent=39 // pred_region
          %s269 = sand.u32 %s31, 1
          %s270 = scalar_lea.sflag [#allocation3], %s269
          %s271 = sand.u32 %s31, 1
          %s272 = smul.addr %s271, 16
          %s273 = scalar_lea.vmem [#allocation2], %s272
          %s274 = smul.u32 2, %s21
          %s276 = ssub.s32 256, 256
          %277 = vsyncadd %s270, %s276
          %s278 = smul.addr %s274, 2
          %s279 = smul.addr %s278, 64
          %s280 = scalar_lea.hbm %s0, %s279
          %s281 = sshll.u32 %s273, 4
          %s282 = int_to_ptr.vmem [resolvable:$true] %s281
          %287 = dma.hbm_to_vmem [thread:$0]  %s280, 256, %s282, %s270, 128, 128, 8
        $region44: #{tpu_custom_call.1} parent=39 // pred_fallthru
          _
      $region40: #{tpu_custom_call.1} parent=5 // pred_fallthru
        _
      %p288 = scmp.le.s32.totalorder 1, %s21
      %p289 = scmp.lt.s32.totalorder %s21, 3
      %p290 = pnand %p288, %p289
      %p291 = pneg %p290
      // Predicated region
      $region45: #{tpu_custom_call.1} parent=5 // pred_check
        _
      $region46: #{tpu_custom_call.1} parent=5 // pred_check_branch
        %293 = sbr.rel (%p290) target = $region48
      $region47: #{tpu_custom_call.1} parent=5 // pred_region
        %s294 = ssub.s32 %s21, 1
        %s295 = sand.u32 %s34, 1
        %s296 = scalar_lea.sflag [#allocation3], %s295
        %s297 = sand.u32 %s34, 1
        %s298 = smul.addr %s297, 16
        %s299 = scalar_lea.vmem [#allocation2], %s298
        // Predicated region
        $region49: #{tpu_custom_call.1} parent=47 // pred_check
          %p300 = pneg %p47
        $region50: #{tpu_custom_call.1} parent=47 // pred_check_branch
          %302 = sbr.rel (%p300) target = $region52
        $region51: #{tpu_custom_call.1} parent=47 // pred_region
          %303 = dma.done %s296, 256
        $region52: #{tpu_custom_call.1} parent=47 // pred_fallthru
          _
        // Predicated region
        $region53: #{tpu_custom_call.1} parent=47 // pred_check
          %p304 = pneg %p68
        $region54: #{tpu_custom_call.1} parent=47 // pred_check_branch
          %306 = sbr.rel (%p304) target = $region56
        $region55: #{tpu_custom_call.1} parent=47 // pred_region
          %307 = dma.done [#allocation6], 4096
        $region56: #{tpu_custom_call.1} parent=47 // pred_fallthru
          _
        // Predicated region
        $region57: #{tpu_custom_call.1} parent=47 // pred_check
          %p308 = pneg %p110
        $region58: #{tpu_custom_call.1} parent=47 // pred_check_branch
          %310 = sbr.rel (%p308) target = $region60
        $region59: #{tpu_custom_call.1} parent=47 // pred_region
          %311 = dma.done [#allocation6], 4096
        $region60: #{tpu_custom_call.1} parent=47 // pred_fallthru
          _
        // Predicated region
        $region61: #{tpu_custom_call.1} parent=47 // pred_check
          %p312 = pneg %p152
        $region62: #{tpu_custom_call.1} parent=47 // pred_check_branch
          %314 = sbr.rel (%p312) target = $region64
        $region63: #{tpu_custom_call.1} parent=47 // pred_region
          %315 = dma.done [#allocation9], 2048
        $region64: #{tpu_custom_call.1} parent=47 // pred_fallthru
          _
        %s316 = sand.u32 %s34, 1
        %s317 = scalar_lea.sflag [#allocation3], %s316
        %s318 = sand.u32 %s34, 1
        %s319 = smul.addr %s318, 16
        %s320 = scalar_lea.vmem [#allocation2], %s319
        %p321 = pneg %p47
        %p322 = pneg %p44
        %p323 = pneg %p68
        %p324 = pneg %p65
        %p325 = pneg %p89
        %p326 = pneg %p86
        %p327 = pneg %p110
        %p328 = pneg %p107
        %p329 = pneg %p131
        %p330 = pneg %p128
        %p331 = pneg %p152
        %p332 = pneg %p149
        %p333 = pneg %p173
        %p334 = pneg %p170
        %p335 = pneg %p199
        %p336 = pneg %p196
        %s337 = sand.u32 %s186, 1
        %s338 = scalar_lea.sflag [#allocation4], %s337
        %s339 = sand.u32 %s186, 1
        %s340 = smul.addr %s339, 16
        %s341 = scalar_lea.vmem [#allocation10], %s340
        %s342 = smul.u32 2, %s26
        %s343 = smul.u32 2, %s26
        %v345 = vld [vmem:[%s299] sm:$0xff]
        %v346 = vld [vmem:[%s299 + $0x8] sm:$0xff]
        %v347 = vld [vmem:[#allocation5] sm:$0xff]
        %v348 = vld [vmem:[#allocation5 + $0x8] sm:$0xff]
        %v349 = vld [vmem:[#allocation5 + $0x10] sm:$0xff]
        %v350 = vld [vmem:[#allocation5 + $0x18] sm:$0xff]
        %v351 = vld [vmem:[#allocation5 + $0x20] sm:$0xff]
        %v352 = vld [vmem:[#allocation5 + $0x28] sm:$0xff]
        %v353 = vld [vmem:[#allocation5 + $0x30] sm:$0xff]
        %v354 = vld [vmem:[#allocation5 + $0x38] sm:$0xff]
        %v355 = vld [vmem:[#allocation5 + $0x40] sm:$0xff]
        %v356 = vld [vmem:[#allocation5 + $0x48] sm:$0xff]
        %v357 = vld [vmem:[#allocation5 + $0x50] sm:$0xff]
        %v358 = vld [vmem:[#allocation5 + $0x58] sm:$0xff]
        %v359 = vld [vmem:[#allocation5 + $0x60] sm:$0xff]
        %v360 = vld [vmem:[#allocation5 + $0x68] sm:$0xff]
        %v361 = vld [vmem:[#allocation5 + $0x70] sm:$0xff]
        %v362 = vld [vmem:[#allocation5 + $0x78] sm:$0xff]
        %v363 = vld [vmem:[#allocation5 + $0x80] sm:$0xff]
        %v364 = vld [vmem:[#allocation5 + $0x88] sm:$0xff]
        %v365 = vld [vmem:[#allocation5 + $0x90] sm:$0xff]
        %v366 = vld [vmem:[#allocation5 + $0x98] sm:$0xff]
        %v367 = vld [vmem:[#allocation5 + $0xa0] sm:$0xff]
        %v368 = vld [vmem:[#allocation5 + $0xa8] sm:$0xff]
        %v369 = vld [vmem:[#allocation5 + $0xb0] sm:$0xff]
        %v370 = vld [vmem:[#allocation5 + $0xb8] sm:$0xff]
        %v371 = vld [vmem:[#allocation5 + $0xc0] sm:$0xff]
        %v372 = vld [vmem:[#allocation5 + $0xc8] sm:$0xff]
        %v373 = vld [vmem:[#allocation5 + $0xd0] sm:$0xff]
        %v374 = vld [vmem:[#allocation5 + $0xd8] sm:$0xff]
        %v375 = vld [vmem:[#allocation5 + $0xe0] sm:$0xff]
        %v376 = vld [vmem:[#allocation5 + $0xe8] sm:$0xff]
        %v377 = vld [vmem:[#allocation5 + $0xf0] sm:$0xff]
        %v378 = vld [vmem:[#allocation5 + $0xf8] sm:$0xff]
        %v379 = vld [vmem:[%s2] sm:$0x3]
        %v381 = vlaneseq
        %v382 = vshrl.u32 %v381, 7
        %v383 = vsub.s32 0, %v382
        %v384 = vrot.slane %v379, %v383
        %v385 = vlaneseq
        %v386 = vshrl.u32 %v385, 7
        %v387 = vsub.s32 1, %v386
        %v388 = vrot.slane %v379, %v387
        %v393 = vunpack.c.l.b16 %v345
        %v394 = vunpack.c.h.b16 %v345
        %v395 = vunpack.c.l.b16 %v346
        %v396 = vunpack.c.h.b16 %v346
        %v397 = vpack.c.b16 %v395, %v393
        %v398 = vpack.c.b16 %v396, %v394
        %v433 = vunpack.c.l.b16 %v347
        %v434 = vunpack.c.h.b16 %v347
        %v435 = vunpack.c.l.b16 %v348
        %v436 = vunpack.c.h.b16 %v348
        %v437 = vunpack.c.l.b16 %v349
        %v438 = vunpack.c.h.b16 %v349
        %v439 = vunpack.c.l.b16 %v350
        %v440 = vunpack.c.h.b16 %v350
        %v441 = vunpack.c.l.b16 %v351
        %v442 = vunpack.c.h.b16 %v351
        %v443 = vunpack.c.l.b16 %v352
        %v444 = vunpack.c.h.b16 %v352
        %v445 = vunpack.c.l.b16 %v353
        %v446 = vunpack.c.h.b16 %v353
        %v447 = vunpack.c.l.b16 %v354
        %v448 = vunpack.c.h.b16 %v354
        %v449 = vunpack.c.l.b16 %v355
        %v450 = vunpack.c.h.b16 %v355
        %v451 = vunpack.c.l.b16 %v356
        %v452 = vunpack.c.h.b16 %v356
        %v453 = vunpack.c.l.b16 %v357
        %v454 = vunpack.c.h.b16 %v357
        %v455 = vunpack.c.l.b16 %v358
        %v456 = vunpack.c.h.b16 %v358
        %v457 = vunpack.c.l.b16 %v359
        %v458 = vunpack.c.h.b16 %v359
        %v459 = vunpack.c.l.b16 %v360
        %v460 = vunpack.c.h.b16 %v360
        %v461 = vunpack.c.l.b16 %v361
        %v462 = vunpack.c.h.b16 %v361
        %v463 = vunpack.c.l.b16 %v362
        %v464 = vunpack.c.h.b16 %v362
        %v465 = vunpack.c.l.b16 %v363
        %v466 = vunpack.c.h.b16 %v363
        %v467 = vunpack.c.l.b16 %v364
        %v468 = vunpack.c.h.b16 %v364
        %v469 = vunpack.c.l.b16 %v365
        %v470 = vunpack.c.h.b16 %v365
        %v471 = vunpack.c.l.b16 %v366
        %v472 = vunpack.c.h.b16 %v366
        %v473 = vunpack.c.l.b16 %v367
        %v474 = vunpack.c.h.b16 %v367
        %v475 = vunpack.c.l.b16 %v368
        %v476 = vunpack.c.h.b16 %v368
        %v477 = vunpack.c.l.b16 %v369
        %v478 = vunpack.c.h.b16 %v369
        %v479 = vunpack.c.l.b16 %v370
        %v480 = vunpack.c.h.b16 %v370
        %v481 = vunpack.c.l.b16 %v371
        %v482 = vunpack.c.h.b16 %v371
        %v483 = vunpack.c.l.b16 %v372
        %v484 = vunpack.c.h.b16 %v372
        %v485 = vunpack.c.l.b16 %v373
        %v486 = vunpack.c.h.b16 %v373
        %v487 = vunpack.c.l.b16 %v374
        %v488 = vunpack.c.h.b16 %v374
        %v489 = vunpack.c.l.b16 %v375
        %v490 = vunpack.c.h.b16 %v375
        %v491 = vunpack.c.l.b16 %v376
        %v492 = vunpack.c.h.b16 %v376
        %v493 = vunpack.c.l.b16 %v377
        %v494 = vunpack.c.h.b16 %v377
        %v495 = vunpack.c.l.b16 %v378
        %v496 = vunpack.c.h.b16 %v378
        %v497 = vpack.c.b16 %v435, %v433
        %v498 = vpack.c.b16 %v436, %v434
        %v499 = vpack.c.b16 %v439, %v437
        %v500 = vpack.c.b16 %v440, %v438
        %v501 = vpack.c.b16 %v443, %v441
        %v502 = vpack.c.b16 %v444, %v442
        %v503 = vpack.c.b16 %v447, %v445
        %v504 = vpack.c.b16 %v448, %v446
        %v505 = vpack.c.b16 %v451, %v449
        %v506 = vpack.c.b16 %v452, %v450
        %v507 = vpack.c.b16 %v455, %v453
        %v508 = vpack.c.b16 %v456, %v454
        %v509 = vpack.c.b16 %v459, %v457
        %v510 = vpack.c.b16 %v460, %v458
        %v511 = vpack.c.b16 %v463, %v461
        %v512 = vpack.c.b16 %v464, %v462
        %v513 = vpack.c.b16 %v467, %v465
        %v514 = vpack.c.b16 %v468, %v466
        %v515 = vpack.c.b16 %v471, %v469
        %v516 = vpack.c.b16 %v472, %v470
        %v517 = vpack.c.b16 %v475, %v473
        %v518 = vpack.c.b16 %v476, %v474
        %v519 = vpack.c.b16 %v479, %v477
        %v520 = vpack.c.b16 %v480, %v478
        %v521 = vpack.c.b16 %v483, %v481
        %v522 = vpack.c.b16 %v484, %v482
        %v523 = vpack.c.b16 %v487, %v485
        %v524 = vpack.c.b16 %v488, %v486
        %v525 = vpack.c.b16 %v491, %v489
        %v526 = vpack.c.b16 %v492, %v490
        %v527 = vpack.c.b16 %v495, %v493
        %v528 = vpack.c.b16 %v496, %v494
        %561 = vmatprep.subr.bf16.mxu0 %v498
        %562 = vmatpush1.bf16.msra.mxu0 %v497
        %563 = vmatprep.subr.bf16.mxu0 %v500
        %564 = vmatpush1.bf16.msra.mxu0 %v499
        %565 = vmatprep.subr.bf16.mxu0 %v502
        %566 = vmatpush1.bf16.msra.mxu0 %v501
        %567 = vmatprep.subr.bf16.mxu0 %v504
        %568 = vmatpush1.bf16.msra.mxu0 %v503
        %569 = vmatprep.subr.bf16.mxu0 %v506
        %570 = vmatpush1.bf16.msra.mxu0 %v505
        %571 = vmatprep.subr.bf16.mxu0 %v508
        %572 = vmatpush1.bf16.msra.mxu0 %v507
        %573 = vmatprep.subr.bf16.mxu0 %v510
        %574 = vmatpush1.bf16.msra.mxu0 %v509
        %575 = vmatprep.subr.bf16.mxu0 %v512
        %576 = vmatpush1.bf16.msra.mxu0 %v511
        %577 = vmatprep.subr.bf16.mxu0 %v514
        %578 = vmatpush1.bf16.msra.mxu0 %v513
        %579 = vmatprep.subr.bf16.mxu0 %v516
        %580 = vmatpush1.bf16.msra.mxu0 %v515
        %581 = vmatprep.subr.bf16.mxu0 %v518
        %582 = vmatpush1.bf16.msra.mxu0 %v517
        %583 = vmatprep.subr.bf16.mxu0 %v520
        %584 = vmatpush1.bf16.msra.mxu0 %v519
        %585 = vmatprep.subr.bf16.mxu0 %v522
        %586 = vmatpush1.bf16.msra.mxu0 %v521
        %587 = vmatprep.subr.bf16.mxu0 %v524
        %588 = vmatpush1.bf16.msra.mxu0 %v523
        %589 = vmatprep.subr.bf16.mxu0 %v526
        %590 = vmatpush1.bf16.msra.mxu0 %v525
        %591 = vmatprep.subr.bf16.mxu0 %v528
        %592 = vmatpush1.bf16.msra.mxu0 %v527
        %593 = vmatprep.mubr.bf16.mxu0 %v398
        %594 = vmatmul.mubr.bf16.gmra.mrb[0].mxu0 %v397
        %v595 = vpop.f32.mrb[0].mxu0
        %v596 = vadd.f32 %v384, %v595
        %v597 = vpop.f32.mrb[0].mxu0
        %v598 = vadd.f32 %v388, %v597
        %v599 = vpop.f32.mrb[0].mxu0
        %v600 = vadd.f32 %v384, %v599
        %v601 = vpop.f32.mrb[0].mxu0
        %v602 = vadd.f32 %v388, %v601
        %603 = vdwg.mxu0
        %v604 = vmax.f32 %v596, 0.0
        %v605 = vmax.f32 %v598, 0.0
        %v606 = vmax.f32 %v600, 0.0
        %v607 = vmax.f32 %v602, 0.0
        %v608 = vunpack.c.l.bf16 %v345
        %v609 = vunpack.c.h.bf16 %v345
        %v610 = vunpack.c.l.bf16 %v346
        %v611 = vunpack.c.h.bf16 %v346
        %v612 = vadd.f32 %v604, %v608
        %v613 = vadd.f32 %v605, %v609
        %v614 = vadd.f32 %v606, %v610
        %v615 = vadd.f32 %v607, %v611
        %v616 = vpack.c.bf16 %v614, %v612
        %v617 = vpack.c.bf16 %v615, %v613
        %v618 = vld [vmem:[#allocation7] sm:$0xff]
        %v619 = vld [vmem:[#allocation7 + $0x8] sm:$0xff]
        %v620 = vld [vmem:[#allocation7 + $0x10] sm:$0xff]
        %v621 = vld [vmem:[#allocation7 + $0x18] sm:$0xff]
        %v622 = vld [vmem:[#allocation7 + $0x20] sm:$0xff]
        %v623 = vld [vmem:[#allocation7 + $0x28] sm:$0xff]
        %v624 = vld [vmem:[#allocation7 + $0x30] sm:$0xff]
        %v625 = vld [vmem:[#allocation7 + $0x38] sm:$0xff]
        %v626 = vld [vmem:[#allocation7 + $0x40] sm:$0xff]
        %v627 = vld [vmem:[#allocation7 + $0x48] sm:$0xff]
        %v628 = vld [vmem:[#allocation7 + $0x50] sm:$0xff]
        %v629 = vld [vmem:[#allocation7 + $0x58] sm:$0xff]
        %v630 = vld [vmem:[#allocation7 + $0x60] sm:$0xff]
        %v631 = vld [vmem:[#allocation7 + $0x68] sm:$0xff]
        %v632 = vld [vmem:[#allocation7 + $0x70] sm:$0xff]
        %v633 = vld [vmem:[#allocation7 + $0x78] sm:$0xff]
        %v634 = vld [vmem:[#allocation7 + $0x80] sm:$0xff]
        %v635 = vld [vmem:[#allocation7 + $0x88] sm:$0xff]
        %v636 = vld [vmem:[#allocation7 + $0x90] sm:$0xff]
        %v637 = vld [vmem:[#allocation7 + $0x98] sm:$0xff]
        %v638 = vld [vmem:[#allocation7 + $0xa0] sm:$0xff]
        %v639 = vld [vmem:[#allocation7 + $0xa8] sm:$0xff]
        %v640 = vld [vmem:[#allocation7 + $0xb0] sm:$0xff]
        %v641 = vld [vmem:[#allocation7 + $0xb8] sm:$0xff]
        %v642 = vld [vmem:[#allocation7 + $0xc0] sm:$0xff]
        %v643 = vld [vmem:[#allocation7 + $0xc8] sm:$0xff]
        %v644 = vld [vmem:[#allocation7 + $0xd0] sm:$0xff]
        %v645 = vld [vmem:[#allocation7 + $0xd8] sm:$0xff]
        %v646 = vld [vmem:[#allocation7 + $0xe0] sm:$0xff]
        %v647 = vld [vmem:[#allocation7 + $0xe8] sm:$0xff]
        %v648 = vld [vmem:[#allocation7 + $0xf0] sm:$0xff]
        %v649 = vld [vmem:[#allocation7 + $0xf8] sm:$0xff]
        %v650 = vld [vmem:[%s4] sm:$0x3]
        %v652 = vlaneseq
        %v653 = vshrl.u32 %v652, 7
        %v654 = vsub.s32 0, %v653
        %v655 = vrot.slane %v650, %v654
        %v656 = vlaneseq
        %v657 = vshrl.u32 %v656, 7
        %v658 = vsub.s32 1, %v657
        %v659 = vrot.slane %v650, %v658
        %v694 = vunpack.c.l.b16 %v618
        %v695 = vunpack.c.h.b16 %v618
        %v696 = vunpack.c.l.b16 %v619
        %v697 = vunpack.c.h.b16 %v619
        %v698 = vunpack.c.l.b16 %v620
        %v699 = vunpack.c.h.b16 %v620
        %v700 = vunpack.c.l.b16 %v621
        %v701 = vunpack.c.h.b16 %v621
        %v702 = vunpack.c.l.b16 %v622
        %v703 = vunpack.c.h.b16 %v622
        %v704 = vunpack.c.l.b16 %v623
        %v705 = vunpack.c.h.b16 %v623
        %v706 = vunpack.c.l.b16 %v624
        %v707 = vunpack.c.h.b16 %v624
        %v708 = vunpack.c.l.b16 %v625
        %v709 = vunpack.c.h.b16 %v625
        %v710 = vunpack.c.l.b16 %v626
        %v711 = vunpack.c.h.b16 %v626
        %v712 = vunpack.c.l.b16 %v627
        %v713 = vunpack.c.h.b16 %v627
        %v714 = vunpack.c.l.b16 %v628
        %v715 = vunpack.c.h.b16 %v628
        %v716 = vunpack.c.l.b16 %v629
        %v717 = vunpack.c.h.b16 %v629
        %v718 = vunpack.c.l.b16 %v630
        %v719 = vunpack.c.h.b16 %v630
        %v720 = vunpack.c.l.b16 %v631
        %v721 = vunpack.c.h.b16 %v631
        %v722 = vunpack.c.l.b16 %v632
        %v723 = vunpack.c.h.b16 %v632
        %v724 = vunpack.c.l.b16 %v633
        %v725 = vunpack.c.h.b16 %v633
        %v726 = vunpack.c.l.b16 %v634
        %v727 = vunpack.c.h.b16 %v634
        %v728 = vunpack.c.l.b16 %v635
        %v729 = vunpack.c.h.b16 %v635
        %v730 = vunpack.c.l.b16 %v636
        %v731 = vunpack.c.h.b16 %v636
        %v732 = vunpack.c.l.b16 %v637
        %v733 = vunpack.c.h.b16 %v637
        %v734 = vunpack.c.l.b16 %v638
        %v735 = vunpack.c.h.b16 %v638
        %v736 = vunpack.c.l.b16 %v639
        %v737 = vunpack.c.h.b16 %v639
        %v738 = vunpack.c.l.b16 %v640
        %v739 = vunpack.c.h.b16 %v640
        %v740 = vunpack.c.l.b16 %v641
        %v741 = vunpack.c.h.b16 %v641
        %v742 = vunpack.c.l.b16 %v642
        %v743 = vunpack.c.h.b16 %v642
        %v744 = vunpack.c.l.b16 %v643
        %v745 = vunpack.c.h.b16 %v643
        %v746 = vunpack.c.l.b16 %v644
        %v747 = vunpack.c.h.b16 %v644
        %v748 = vunpack.c.l.b16 %v645
        %v749 = vunpack.c.h.b16 %v645
        %v750 = vunpack.c.l.b16 %v646
        %v751 = vunpack.c.h.b16 %v646
        %v752 = vunpack.c.l.b16 %v647
        %v753 = vunpack.c.h.b16 %v647
        %v754 = vunpack.c.l.b16 %v648
        %v755 = vunpack.c.h.b16 %v648
        %v756 = vunpack.c.l.b16 %v649
        %v757 = vunpack.c.h.b16 %v649
        %v758 = vpack.c.b16 %v696, %v694
        %v759 = vpack.c.b16 %v697, %v695
        %v760 = vpack.c.b16 %v700, %v698
        %v761 = vpack.c.b16 %v701, %v699
        %v762 = vpack.c.b16 %v704, %v702
        %v763 = vpack.c.b16 %v705, %v703
        %v764 = vpack.c.b16 %v708, %v706
        %v765 = vpack.c.b16 %v709, %v707
        %v766 = vpack.c.b16 %v712, %v710
        %v767 = vpack.c.b16 %v713, %v711
        %v768 = vpack.c.b16 %v716, %v714
        %v769 = vpack.c.b16 %v717, %v715
        %v770 = vpack.c.b16 %v720, %v718
        %v771 = vpack.c.b16 %v721, %v719
        %v772 = vpack.c.b16 %v724, %v722
        %v773 = vpack.c.b16 %v725, %v723
        %v774 = vpack.c.b16 %v728, %v726
        %v775 = vpack.c.b16 %v729, %v727
        %v776 = vpack.c.b16 %v732, %v730
        %v777 = vpack.c.b16 %v733, %v731
        %v778 = vpack.c.b16 %v736, %v734
        %v779 = vpack.c.b16 %v737, %v735
        %v780 = vpack.c.b16 %v740, %v738
        %v781 = vpack.c.b16 %v741, %v739
        %v782 = vpack.c.b16 %v744, %v742
        %v783 = vpack.c.b16 %v745, %v743
        %v784 = vpack.c.b16 %v748, %v746
        %v785 = vpack.c.b16 %v749, %v747
        %v786 = vpack.c.b16 %v752, %v750
        %v787 = vpack.c.b16 %v753, %v751
        %v788 = vpack.c.b16 %v756, %v754
        %v789 = vpack.c.b16 %v757, %v755
        %822 = vmatprep.subr.bf16.mxu0 %v759
        %823 = vmatpush1.bf16.msra.mxu0 %v758
        %824 = vmatprep.subr.bf16.mxu0 %v761
        %825 = vmatpush1.bf16.msra.mxu0 %v760
        %826 = vmatprep.subr.bf16.mxu0 %v763
        %827 = vmatpush1.bf16.msra.mxu0 %v762
        %828 = vmatprep.subr.bf16.mxu0 %v765
        %829 = vmatpush1.bf16.msra.mxu0 %v764
        %830 = vmatprep.subr.bf16.mxu0 %v767
        %831 = vmatpush1.bf16.msra.mxu0 %v766
        %832 = vmatprep.subr.bf16.mxu0 %v769
        %833 = vmatpush1.bf16.msra.mxu0 %v768
        %834 = vmatprep.subr.bf16.mxu0 %v771
        %835 = vmatpush1.bf16.msra.mxu0 %v770
        %836 = vmatprep.subr.bf16.mxu0 %v773
        %837 = vmatpush1.bf16.msra.mxu0 %v772
        %838 = vmatprep.subr.bf16.mxu0 %v775
        %839 = vmatpush1.bf16.msra.mxu0 %v774
        %840 = vmatprep.subr.bf16.mxu0 %v777
        %841 = vmatpush1.bf16.msra.mxu0 %v776
        %842 = vmatprep.subr.bf16.mxu0 %v779
        %843 = vmatpush1.bf16.msra.mxu0 %v778
        %844 = vmatprep.subr.bf16.mxu0 %v781
        %845 = vmatpush1.bf16.msra.mxu0 %v780
        %846 = vmatprep.subr.bf16.mxu0 %v783
        %847 = vmatpush1.bf16.msra.mxu0 %v782
        %848 = vmatprep.subr.bf16.mxu0 %v785
        %849 = vmatpush1.bf16.msra.mxu0 %v784
        %850 = vmatprep.subr.bf16.mxu0 %v787
        %851 = vmatpush1.bf16.msra.mxu0 %v786
        %852 = vmatprep.subr.bf16.mxu0 %v789
        %853 = vmatpush1.bf16.msra.mxu0 %v788
        %854 = vmatprep.mubr.bf16.mxu0 %v617
        %855 = vmatmul.mubr.bf16.gmra.mrb[0].mxu0 %v616
        %v856 = vpop.f32.mrb[0].mxu0
        %v857 = vadd.f32 %v655, %v856
        %v858 = vpop.f32.mrb[0].mxu0
        %v859 = vadd.f32 %v659, %v858
        %v860 = vpop.f32.mrb[0].mxu0
        %v861 = vadd.f32 %v655, %v860
        %v862 = vpop.f32.mrb[0].mxu0
        %v863 = vadd.f32 %v659, %v862
        %864 = vdwg.mxu0
        %v865 = vmax.f32 %v857, 0.0
        %v866 = vmax.f32 %v859, 0.0
        %v867 = vmax.f32 %v861, 0.0
        %v868 = vmax.f32 %v863, 0.0
        %v869 = vadd.f32 %v865, %v612
        %v870 = vadd.f32 %v866, %v613
        %v871 = vadd.f32 %v867, %v614
        %v872 = vadd.f32 %v868, %v615
        %v873 = vpack.c.bf16 %v871, %v869
        %v874 = vpack.c.bf16 %v872, %v870
        %v875 = vld [vmem:[#allocation8] sm:$0xf]
        %v876 = vld [vmem:[#allocation8 + $0x4] sm:$0xf]
        %v877 = vld [vmem:[#allocation8 + $0x8] sm:$0xf]
        %v878 = vld [vmem:[#allocation8 + $0xc] sm:$0xf]
        %v879 = vld [vmem:[#allocation8 + $0x10] sm:$0xf]
        %v880 = vld [vmem:[#allocation8 + $0x14] sm:$0xf]
        %v881 = vld [vmem:[#allocation8 + $0x18] sm:$0xf]
        %v882 = vld [vmem:[#allocation8 + $0x1c] sm:$0xf]
        %v883 = vld [vmem:[#allocation8 + $0x20] sm:$0xf]
        %v884 = vld [vmem:[#allocation8 + $0x24] sm:$0xf]
        %v885 = vld [vmem:[#allocation8 + $0x28] sm:$0xf]
        %v886 = vld [vmem:[#allocation8 + $0x2c] sm:$0xf]
        %v887 = vld [vmem:[#allocation8 + $0x30] sm:$0xf]
        %v888 = vld [vmem:[#allocation8 + $0x34] sm:$0xf]
        %v889 = vld [vmem:[#allocation8 + $0x38] sm:$0xf]
        %v890 = vld [vmem:[#allocation8 + $0x3c] sm:$0xf]
        %v891 = vld [vmem:[#allocation8 + $0x40] sm:$0xf]
        %v892 = vld [vmem:[#allocation8 + $0x44] sm:$0xf]
        %v893 = vld [vmem:[#allocation8 + $0x48] sm:$0xf]
        %v894 = vld [vmem:[#allocation8 + $0x4c] sm:$0xf]
        %v895 = vld [vmem:[#allocation8 + $0x50] sm:$0xf]
        %v896 = vld [vmem:[#allocation8 + $0x54] sm:$0xf]
        %v897 = vld [vmem:[#allocation8 + $0x58] sm:$0xf]
        %v898 = vld [vmem:[#allocation8 + $0x5c] sm:$0xf]
        %v899 = vld [vmem:[#allocation8 + $0x60] sm:$0xf]
        %v900 = vld [vmem:[#allocation8 + $0x64] sm:$0xf]
        %v901 = vld [vmem:[#allocation8 + $0x68] sm:$0xf]
        %v902 = vld [vmem:[#allocation8 + $0x6c] sm:$0xf]
        %v903 = vld [vmem:[#allocation8 + $0x70] sm:$0xf]
        %v904 = vld [vmem:[#allocation8 + $0x74] sm:$0xf]
        %v905 = vld [vmem:[#allocation8 + $0x78] sm:$0xf]
        %v906 = vld [vmem:[#allocation8 + $0x7c] sm:$0xf]
        %v907 = vld [vmem:[%s6] sm:$0x1]
        %v909 = vlaneseq
        %v910 = vshrl.u32 %v909, 7
        %v911 = vsub.s32 0, %v910
        %v912 = vrot.slane %v907, %v911
        %v946 = vunpack.c.l.b16 %v875
        %v947 = vunpack.c.l.b16 %v876
        %v948 = vunpack.c.l.b16 %v877
        %v949 = vunpack.c.l.b16 %v878
        %v950 = vunpack.c.l.b16 %v879
        %v951 = vunpack.c.l.b16 %v880
        %v952 = vunpack.c.l.b16 %v881
        %v953 = vunpack.c.l.b16 %v882
        %v954 = vunpack.c.l.b16 %v883
        %v955 = vunpack.c.l.b16 %v884
        %v956 = vunpack.c.l.b16 %v885
        %v957 = vunpack.c.l.b16 %v886
        %v958 = vunpack.c.l.b16 %v887
        %v959 = vunpack.c.l.b16 %v888
        %v960 = vunpack.c.l.b16 %v889
        %v961 = vunpack.c.l.b16 %v890
        %v962 = vunpack.c.l.b16 %v891
        %v963 = vunpack.c.l.b16 %v892
        %v964 = vunpack.c.l.b16 %v893
        %v965 = vunpack.c.l.b16 %v894
        %v966 = vunpack.c.l.b16 %v895
        %v967 = vunpack.c.l.b16 %v896
        %v968 = vunpack.c.l.b16 %v897
        %v969 = vunpack.c.l.b16 %v898
        %v970 = vunpack.c.l.b16 %v899
        %v971 = vunpack.c.l.b16 %v900
        %v972 = vunpack.c.l.b16 %v901
        %v973 = vunpack.c.l.b16 %v902
        %v974 = vunpack.c.l.b16 %v903
        %v975 = vunpack.c.l.b16 %v904
        %v976 = vunpack.c.l.b16 %v905
        %v977 = vunpack.c.l.b16 %v906
        %v978 = vpack.c.b16 %v947, %v946
        %v979 = vpack.c.b16 %v949, %v948
        %v980 = vpack.c.b16 %v951, %v950
        %v981 = vpack.c.b16 %v953, %v952
        %v982 = vpack.c.b16 %v955, %v954
        %v983 = vpack.c.b16 %v957, %v956
        %v984 = vpack.c.b16 %v959, %v958
        %v985 = vpack.c.b16 %v961, %v960
        %v986 = vpack.c.b16 %v963, %v962
        %v987 = vpack.c.b16 %v965, %v964
        %v988 = vpack.c.b16 %v967, %v966
        %v989 = vpack.c.b16 %v969, %v968
        %v990 = vpack.c.b16 %v971, %v970
        %v991 = vpack.c.b16 %v973, %v972
        %v992 = vpack.c.b16 %v975, %v974
        %v993 = vpack.c.b16 %v977, %v976
        %1010 = vmatprep.subr.bf16.mxu0 0
        %1011 = vmatpush1.bf16.msra.mxu0 %v978
        %1012 = vmatprep.subr.bf16.mxu0 0
        %1013 = vmatpush1.bf16.msra.mxu0 %v979
        %1014 = vmatprep.subr.bf16.mxu0 0
        %1015 = vmatpush1.bf16.msra.mxu0 %v980
        %1016 = vmatprep.subr.bf16.mxu0 0
        %1017 = vmatpush1.bf16.msra.mxu0 %v981
        %1018 = vmatprep.subr.bf16.mxu0 0
        %1019 = vmatpush1.bf16.msra.mxu0 %v982
        %1020 = vmatprep.subr.bf16.mxu0 0
        %1021 = vmatpush1.bf16.msra.mxu0 %v983
        %1022 = vmatprep.subr.bf16.mxu0 0
        %1023 = vmatpush1.bf16.msra.mxu0 %v984
        %1024 = vmatprep.subr.bf16.mxu0 0
        %1025 = vmatpush1.bf16.msra.mxu0 %v985
        %1026 = vmatprep.subr.bf16.mxu0 0
        %1027 = vmatpush1.bf16.msra.mxu0 %v986
        %1028 = vmatprep.subr.bf16.mxu0 0
        %1029 = vmatpush1.bf16.msra.mxu0 %v987
        %1030 = vmatprep.subr.bf16.mxu0 0
        %1031 = vmatpush1.bf16.msra.mxu0 %v988
        %1032 = vmatprep.subr.bf16.mxu0 0
        %1033 = vmatpush1.bf16.msra.mxu0 %v989
        %1034 = vmatprep.subr.bf16.mxu0 0
        %1035 = vmatpush1.bf16.msra.mxu0 %v990
        %1036 = vmatprep.subr.bf16.mxu0 0
        %1037 = vmatpush1.bf16.msra.mxu0 %v991
        %1038 = vmatprep.subr.bf16.mxu0 0
        %1039 = vmatpush1.bf16.msra.mxu0 %v992
        %1040 = vmatprep.subr.bf16.mxu0 0
        %1041 = vmatpush1.bf16.msra.mxu0 %v993
        %1042 = vmatprep.mubr.bf16.mxu0 %v874
        %1043 = vmatmul.mubr.bf16.gmra.mrb[0].mxu0 %v873
        %v1044 = vpop.f32.mrb[0].mxu0
        %v1045 = vadd.f32 %v912, %v1044
        %v1046 = vpop.f32.mrb[0].mxu0
        %v1047 = vpop.f32.mrb[0].mxu0
        %v1048 = vadd.f32 %v912, %v1047
        %v1049 = vpop.f32.mrb[0].mxu0
        %1050 = vdwg.mxu0
        %1051 = vst [vmem:[%s341] sm:$0xff] %v1045
        %1052 = vst [vmem:[%s341 + $0x8] sm:$0xff] %v1048
        %s1053 = sand.u32 %s186, 1
        %s1054 = scalar_lea.sflag [#allocation4], %s1053
        %s1055 = sand.u32 %s186, 1
        %s1056 = smul.addr %s1055, 16
        %s1057 = scalar_lea.vmem [#allocation10], %s1056
        // Predicated region
        $region65: #{tpu_custom_call.1} parent=47 // pred_check
          %p1058 = pneg %p196
        $region66: #{tpu_custom_call.1} parent=47 // pred_check_branch
          %1060 = sbr.rel (%p1058) target = $region68
        $region67: #{tpu_custom_call.1} parent=47 // pred_region
          %s1061 = smul.u32 2, %s26
          %s1063 = ssub.s32 256, 256
          %1064 = vsyncadd %s1054, %s1063
          %s1065 = smul.addr %s1061, 128
          %s1066 = scalar_lea.hbm %s7, %s1065
          %s1067 = sshll.u32 %s1057, 4
          %s1068 = int_to_ptr.vmem [resolvable:$true] %s1067
          %1073 = dma.vmem_to_hbm [thread:$0]  %s1068, 256, %s1066, %s1054, 128, 128, 8
        $region68: #{tpu_custom_call.1} parent=47 // pred_fallthru
          _
      $region48: #{tpu_custom_call.1} parent=5 // pred_fallthru
        _
      %p1074 = scmp.le.s32.totalorder 2, %s21
      // Predicated region
      $region69: #{tpu_custom_call.1} parent=5 // pred_check
        %p1075 = pneg %p1074
      $region70: #{tpu_custom_call.1} parent=5 // pred_check_branch
        %1077 = sbr.rel (%p1075) target = $region72
      $region71: #{tpu_custom_call.1} parent=5 // pred_region
        %s1078 = ssub.s32 %s21, 2
        // Predicated region
        $region73: #{tpu_custom_call.1} parent=71 // pred_check
          %p1079 = pneg %p202
        $region74: #{tpu_custom_call.1} parent=71 // pred_check_branch
          %1081 = sbr.rel (%p1079) target = $region76
        $region75: #{tpu_custom_call.1} parent=71 // pred_region
          %s1082 = sand.u32 %s187, 1
          %s1083 = scalar_lea.sflag [#allocation4], %s1082
          %s1084 = sand.u32 %s187, 1
          %s1085 = smul.addr %s1084, 16
          %s1086 = scalar_lea.vmem [#allocation10], %s1085
          %1087 = dma.done %s1083, 256
        $region76: #{tpu_custom_call.1} parent=71 // pred_fallthru
          _
      $region72: #{tpu_custom_call.1} parent=5 // pred_fallthru
        _
    $region6: #{tpu_custom_call.1} parent=1 // loop_footer
      %s25 = sadd.s32 1, %s21
    $region7: #{tpu_custom_call.1} parent=1 // loop_footer_branch
      %20 = sbr.rel target = $region3
    $region8: #{tpu_custom_call.1} parent=1 // loop_exit
      _
    %1088 = vsyncpa [#allocation3], 1
    %s1089 = scalar_lea.sflag [#allocation3], 1
    %1090 = vsyncpa %s1089, 1
    %1091 = vsyncpa [#allocation6], 1
    %1092 = vsyncpa [#allocation9], 1
    %1093 = vsyncpa [#allocation4], 1
    %s1094 = scalar_lea.sflag [#allocation4], 1
    %1095 = vsyncpa %s1094, 1

</llo_original>
